<compile_context>
chip_gen: v5e
topology: v5e:2x2
jax: 0.10.0
libtpu: 0.0.40
codegen_flags: <defaults>
</compile_context>

<pallas_src>
import functools

import jax
import jax.numpy as jnp
from jax.experimental import pallas as pl
from jax.experimental.pallas import tpu as pltpu

_LANE = 128


def _self_attention_kernel(xq_ref, xk_ref, o_ref, acc_ref, *, inv_scale,
                           compute_dtype):
    """One (batch-tile, key-tile) grid step.

    xq_ref : (Bt, S,  Hp)  queries -- full sequence, resident across j steps
    xk_ref : (Bt, tj, Hp)  keys/values for this key tile
    o_ref  : (Bt, S,  Hp)  output block (written at the last key step)
    acc_ref: (Bt, S,  Hp)  f32 accumulator scratch
    """
    j = pl.program_id(1)

    @pl.when(j == 0)
    def _init():
        acc_ref[...] = jnp.zeros_like(acc_ref)

    xq = xq_ref[...]
    xk = xk_ref[...]

    # Fold 1/sqrt(H) into the query operand (O(S*H), not O(S^2)) and cast both
    # matmul operands to the MXU compute dtype (bf16 for f32 inputs).
    q = (xq * inv_scale).astype(compute_dtype)
    k = xk.astype(compute_dtype)

    # scores[b,i,jt] = <q_bi, k_bjt>: batched last-dim contraction (no XLU
    # transpose), f32 accumulation on the MXU.
    scores = jnp.einsum("bik,bjk->bij", q, k,
                        preferred_element_type=jnp.float32)      # (Bt, S, tj)

    # torch softmax(dim=1): normalize over the query index i.  The full i
    # extent is resident, so the statistics for this key tile are exact.
    m = jnp.max(scores, axis=1, keepdims=True)                   # (Bt, 1, tj)
    e = jnp.exp(scores - m)                                      # (Bt, S, tj) f32
    denom = jnp.sum(e, axis=1, keepdims=True)                    # (Bt, 1, tj)
    exact = jnp.dtype(compute_dtype) == jnp.dtype(jnp.float32)
    inv_d = pl.reciprocal(denom, approx=not exact)               # tiny tensor

    # Fold 1/denom into the value rows (indexed by j): O(tj*H) multiply instead
    # of scaling the (S, tj) weights.
    inv_d_rows = jnp.swapaxes(inv_d, 1, 2)                       # (Bt, tj, 1)
    v = (xk * inv_d_rows.astype(xk.dtype)).astype(compute_dtype)

    # TODO(synk): on v6e/v7x the exp could run in bf16 (bf16 EUP) to halve the
    # S*tj transcendental cost; kept in f32 here for accuracy on all chips.
    acc_ref[...] += jnp.einsum("bij,bjk->bik", e.astype(compute_dtype), v,
                               preferred_element_type=jnp.float32)

    @pl.when(j == pl.num_programs(1) - 1)
    def _store():
        o_ref[...] = acc_ref[...].astype(o_ref.dtype)


def _vmem_capacity_bytes():
    """Physical VMEM per core; conservative 64 MiB (v7x) fallback."""
    try:
        cap = getattr(pltpu.get_tpu_info(), "vmem_capacity_bytes", None)
        if cap:
            return int(cap)
    except Exception:
        pass
    return 64 * 1024 * 1024


def _footprint_bytes(bt, tj, seq, hp, in_isz, c_isz):
    """Per-grid-step VMEM estimate: pipeline buffers + every live temporary."""
    dbl = 2                                            # double-buffered blocks
    io = dbl * bt * hp * in_isz * (seq + tj + seq)     # xq + xk + out blocks
    acc = bt * seq * hp * 4                            # f32 accumulator scratch
    exp_f32 = 2 * bt * seq * tj * 4                    # f32 scores + exp
    exp_c = bt * seq * tj * c_isz                      # cast of e for the MXU
    q = bt * seq * hp * c_isz                          # scaled/cast queries
    v = bt * tj * hp * c_isz                           # scaled/cast values
    pv = bt * seq * hp * 4                             # f32 einsum result (+=)
    return int(1.3 * (io + acc + exp_f32 + exp_c + q + v + pv))


def _choose_tiles(batch, seq, hp, in_isz, c_isz, budget,
                  batch_tile=None, key_tile=None):
    """Pick (bt, tj): largest tiles fitting `budget`, preferring >=2 batch grid
    steps (v7x megacore sharding / pipeline overlap) and lane-dense tj."""
    if key_tile is not None:
        tj_cands = [key_tile]
    else:
        tj_cands = sorted({seq} | {t for t in range(_LANE, seq, _LANE)
                                   if seq % t == 0}, reverse=True)
    if batch_tile is not None:
        bt_cands = [batch_tile]
    else:
        bt_cands = sorted([d for d in range(1, batch + 1) if batch % d == 0],
                          reverse=True)

    def best_tj(bt):
        for tj in tj_cands:
            if _footprint_bytes(bt, tj, seq, hp, in_isz, c_isz) <= budget:
                return tj
        return None

    for multi_step_only in (True, False):
        for bt in bt_cands:
            if multi_step_only and batch // bt < 2:
                continue
            tj = best_tj(bt)
            if tj is not None:
                return bt, tj
    # Nothing fits the heuristic budget; take the smallest tiles and let the
    # (larger) vmem_limit_bytes absorb it.
    return bt_cands[-1], tj_cands[-1]


def self_attention(inputs, *, use_bf16_mxu=True, batch_tile=None, key_tile=None):
    """inputs: (seq_len, batch, hdim) -> (seq_len, batch, hdim)."""
    seq_len, batch, hdim = inputs.shape
    in_dtype = inputs.dtype
    if use_bf16_mxu and jnp.dtype(in_dtype) == jnp.dtype(jnp.float32):
        compute_dtype = jnp.bfloat16       # bf16 MXU operands, f32 accumulation
    else:
        compute_dtype = in_dtype
    in_isz = jnp.dtype(in_dtype).itemsize
    c_isz = jnp.dtype(compute_dtype).itemsize

    # (S, B, H) -> (B, S, H) glue outside the kernel.
    x_bsh = jnp.transpose(inputs, (1, 0, 2))

    # Pad hdim to a lane-dense multiple of 128; zero columns are exact (they
    # contribute nothing to the dot products) and are sliced off afterwards.
    hp = -(-hdim // _LANE) * _LANE
    if hp != hdim:
        x_bsh = jnp.pad(x_bsh, ((0, 0), (0, 0), (0, hp - hdim)))

    # Generation-aware VMEM: ~1/2 of physical VMEM as tiling budget, ~3/4 as
    # the scoped limit (96 MiB on v5e/v6e's 128 MiB, 48 MiB on v7x's 64 MiB).
    cap = _vmem_capacity_bytes()
    budget = cap // 2
    vmem_limit = (3 * cap) // 4

    bt, tj = _choose_tiles(batch, seq_len, hp, in_isz, c_isz, budget,
                           batch_tile=batch_tile, key_tile=key_tile)
    assert batch % bt == 0 and seq_len % tj == 0
    grid = (batch // bt, seq_len // tj)        # key axis last ("arbitrary")

    kernel = functools.partial(
        _self_attention_kernel,
        inv_scale=1.0 / (float(hdim) ** 0.5),  # uses the ORIGINAL hdim
        compute_dtype=compute_dtype)

    out_bsh = pl.pallas_call(
        kernel,
        out_shape=jax.ShapeDtypeStruct((batch, seq_len, hp), in_dtype),
        grid_spec=pltpu.PrefetchScalarGridSpec(
            num_scalar_prefetch=0,
            grid=grid,
            in_specs=[
                # Queries: full sequence, block index invariant across j steps.
                pl.BlockSpec((bt, seq_len, hp), lambda b, j: (b, 0, 0)),
                # Keys/values: one key tile per j step.
                pl.BlockSpec((bt, tj, hp), lambda b, j: (b, j, 0)),
            ],
            out_specs=pl.BlockSpec((bt, seq_len, hp), lambda b, j: (b, 0, 0)),
            scratch_shapes=[pltpu.VMEM((bt, seq_len, hp), jnp.float32)],
        ),
        compiler_params=pltpu.CompilerParams(
            dimension_semantics=("parallel", "arbitrary"),
            vmem_limit_bytes=int(vmem_limit)),
    )(x_bsh, x_bsh)

    if hp != hdim:
        out_bsh = out_bsh[:, :, :hdim]
    return jnp.transpose(out_bsh, (1, 0, 2))   # back to (S, B, H)


def _reference(inputs):
    """Pure-JAX mirror of the PyTorch module (exact f32)."""
    seq_len, batch, hdim = inputs.shape
    x = jnp.transpose(inputs, (1, 0, 2)).astype(jnp.float32)       # (B, S, H)
    scores = jnp.einsum("bik,bjk->bij", x, x,
                        precision=jax.lax.Precision.HIGHEST)
    scores = scores / jnp.sqrt(jnp.float32(hdim))
    weights = jax.nn.softmax(scores, axis=1)                       # dim=1
    attn = jnp.einsum("bij,bjk->bik", weights, x,
                      precision=jax.lax.Precision.HIGHEST)
    return jnp.transpose(attn, (1, 0, 2))


if __name__ == "__main__":
    k0, k1 = jax.random.split(jax.random.PRNGKey(0))

    # Toy shape implied by the module: (seq_len=8, batch=2, hdim=32).
    seq_len, batch, hdim = 8, 2, 32
    x = jax.random.normal(k0, (seq_len, batch, hdim), dtype=jnp.float32)
    ref = _reference(x)

    # Exact-operand path (f32 MXU).  Tolerances are deliberately conservative
    # so the check is robust across MXU precision modes; typical error ~1e-6.
    out_f32 = jax.block_until_ready(self_attention(x, use_bf16_mxu=False))
    assert out_f32.shape == (seq_len, batch, hdim)
    assert jnp.allclose(out_f32, ref, atol=5e-2, rtol=5e-2)

    # Default fast path: bf16 MXU operands, f32 accumulation.
    out_fast = jax.block_until_ready(self_attention(x))
    assert out_fast.shape == (seq_len, batch, hdim)
    assert jnp.allclose(out_fast, ref, atol=8e-2, rtol=8e-2)

    # bf16 inputs (flash-style bf16 weights before the PV matmul).
    xb = x.astype(jnp.bfloat16)
    out_bf16 = jax.block_until_ready(self_attention(xb))
    assert jnp.allclose(out_bf16.astype(jnp.float32), _reference(xb),
                        atol=1.5e-1, rtol=1.5e-1)

    # Key-tiled accumulator path: 2 batch steps x 2 key steps, lane-dense H.
    s2, b2, h2 = 256, 2, 128
    x2 = jax.random.normal(k1, (s2, b2, h2), dtype=jnp.float32)
    out2 = jax.block_until_ready(
        self_attention(x2, use_bf16_mxu=False, key_tile=128))
    assert jnp.allclose(out2, _reference(x2), atol=5e-2, rtol=5e-2)

    print("KERNEL_OK")
</pallas_src>

<mosaic_0001>
module attributes {stable_mosaic.version = 11 : i64} {
  func.func @_self_attention_kernel(%arg0: i32, %arg1: i32, %arg2: memref<1x8x128xf32, #tpu.memory_space<vmem>>, %arg3: memref<1x8x128xf32, #tpu.memory_space<vmem>>, %arg4: memref<1x8x128xf32, #tpu.memory_space<vmem>>, %arg5: memref<1x8x128xf32, #tpu.memory_space<vmem>>) attributes {dimension_semantics = [#tpu.dimension_semantics<parallel>, #tpu.dimension_semantics<arbitrary>], iteration_bounds = array<i64: 2, 1>, scalar_prefetch = 0 : i64, scratch_operands = 1 : i64, tpu.core_type = #tpu.core_type<tc>, window_params = [{transform_indices = @transform_0, window_bounds = array<i64: 1, 8, 128>}, {transform_indices = @transform_1, window_bounds = array<i64: 1, 8, 128>}, {transform_indices = @transform_2, window_bounds = array<i64: 1, 8, 128>}]} {
    %c0_i32 = arith.constant 0 : i32
    %0 = arith.cmpi eq, %arg1, %c0_i32 : i32
    %1 = arith.extui %0 : i1 to i32
    %c0_i32_0 = arith.constant 0 : i32
    %2 = arith.cmpi ne, %1, %c0_i32_0 : i32
    scf.if %2 {
      %cst_18 = arith.constant 0.000000e+00 : f32
      %26 = vector.broadcast %cst_18 : f32 to vector<1x8x128xf32>
      %c0_19 = arith.constant 0 : index
      %c0_20 = arith.constant 0 : index
      %c0_21 = arith.constant 0 : index
      %27 = vector.load %arg5[%c0_19, %c0_20, %c0_21] : memref<1x8x128xf32, #tpu.memory_space<vmem>>, vector<1x8x128xf32>
      tpu.vector_store %arg5[%c0_19, %c0_20, %c0_21], %26 {strides = array<i32>} : memref<1x8x128xf32, #tpu.memory_space<vmem>>, vector<1x8x128xf32>,
    } else {
    }
    %c0 = arith.constant 0 : index
    %c0_1 = arith.constant 0 : index
    %c0_2 = arith.constant 0 : index
    %3 = vector.load %arg2[%c0, %c0_1, %c0_2] : memref<1x8x128xf32, #tpu.memory_space<vmem>>, vector<1x8x128xf32>
    %c0_3 = arith.constant 0 : index
    %c0_4 = arith.constant 0 : index
    %c0_5 = arith.constant 0 : index
    %4 = vector.load %arg3[%c0_3, %c0_4, %c0_5] : memref<1x8x128xf32, #tpu.memory_space<vmem>>, vector<1x8x128xf32>
    %cst = arith.constant 0.176776692 : f32
    %5 = vector.broadcast %cst : f32 to vector<1x8x128xf32>
    %6 = arith.mulf %3, %5 : vector<1x8x128xf32>
    "tpu.trace_start"() <{level = 10 : i32, message = "bik,bjk->bij"}> : () -> ()
    %cst_6 = arith.constant dense<0.000000e+00> : vector<1x8x8xf32>
    %7 = tpu.matmul %6, %4, %cst_6 {dimension_numbers = #tpu.dot_dimension_numbers<[2], [2], [1], [1], [0, 0, 0, 1, 1, 1], [0], [0]>} : vector<1x8x128xf32>, vector<1x8x128xf32>, vector<1x8x8xf32> -> vector<1x8x8xf32>
    "tpu.trace_stop"() : () -> ()
    %cst_7 = arith.constant dense<0xFF800000> : vector<1x8xf32>
    %8 = vector.multi_reduction <maximumf>, %7, %cst_7 [1] : vector<1x8x8xf32> to vector<1x8xf32>
    %9 = vector.shape_cast %8 : vector<1x8xf32> to vector<1x1x8xf32>
    %10 = vector.broadcast %9 : vector<1x1x8xf32> to vector<1x8x8xf32>
    %11 = arith.subf %7, %10 : vector<1x8x8xf32>
    %12 = math.exp %11 : vector<1x8x8xf32>
    %cst_8 = arith.constant dense<0.000000e+00> : vector<1x8xf32>
    %13 = vector.multi_reduction <add>, %12, %cst_8 [1] : vector<1x8x8xf32> to vector<1x8xf32>
    %14 = vector.shape_cast %13 : vector<1x8xf32> to vector<1x1x8xf32>
    %15 = tpu.reciprocal %14 : vector<1x1x8xf32> -> vector<1x1x8xf32>
    %16 = tpu.transpose %15, [0, 2, 1] : vector<1x1x8xf32> -> vector<1x8x1xf32>
    %17 = vector.broadcast %16 : vector<1x8x1xf32> to vector<1x8x128xf32>
    %18 = arith.mulf %4, %17 : vector<1x8x128xf32>
    %c0_9 = arith.constant 0 : index
    %c0_10 = arith.constant 0 : index
    %c0_11 = arith.constant 0 : index
    %19 = vector.load %arg5[%c0_9, %c0_10, %c0_11] : memref<1x8x128xf32, #tpu.memory_space<vmem>>, vector<1x8x128xf32>
    "tpu.trace_start"() <{level = 10 : i32, message = "bij,bjk->bik"}> : () -> ()
    %cst_12 = arith.constant dense<0.000000e+00> : vector<1x8x128xf32>
    %20 = tpu.matmul %12, %18, %cst_12 {dimension_numbers = #tpu.dot_dimension_numbers<[2], [1], [1], [2], [0, 0, 0, 1, 1, 2], [0], [0]>} : vector<1x8x8xf32>, vector<1x8x128xf32>, vector<1x8x128xf32> -> vector<1x8x128xf32>
    "tpu.trace_stop"() : () -> ()
    %21 = arith.addf %19, %20 : vector<1x8x128xf32>
    %c0_13 = arith.constant 0 : index
    %c0_14 = arith.constant 0 : index
    %c0_15 = arith.constant 0 : index
    %22 = vector.load %arg5[%c0_13, %c0_14, %c0_15] : memref<1x8x128xf32, #tpu.memory_space<vmem>>, vector<1x8x128xf32>
    tpu.vector_store %arg5[%c0_13, %c0_14, %c0_15], %21 {strides = array<i32>} : memref<1x8x128xf32, #tpu.memory_space<vmem>>, vector<1x8x128xf32>,
    %c0_i32_16 = arith.constant 0 : i32
    %23 = arith.cmpi eq, %arg1, %c0_i32_16 : i32
    %24 = arith.extui %23 : i1 to i32
    %c0_i32_17 = arith.constant 0 : i32
    %25 = arith.cmpi ne, %24, %c0_i32_17 : i32
    scf.if %25 {
      %c0_18 = arith.constant 0 : index
      %c0_19 = arith.constant 0 : index
      %c0_20 = arith.constant 0 : index
      %26 = vector.load %arg5[%c0_18, %c0_19, %c0_20] : memref<1x8x128xf32, #tpu.memory_space<vmem>>, vector<1x8x128xf32>
      %c0_21 = arith.constant 0 : index
      %c0_22 = arith.constant 0 : index
      %c0_23 = arith.constant 0 : index
      %27 = vector.load %arg4[%c0_21, %c0_22, %c0_23] : memref<1x8x128xf32, #tpu.memory_space<vmem>>, vector<1x8x128xf32>
      tpu.vector_store %arg4[%c0_21, %c0_22, %c0_23], %26 {strides = array<i32>} : memref<1x8x128xf32, #tpu.memory_space<vmem>>, vector<1x8x128xf32>,
    } else {
    }
    return
  }
  func.func @transform_0(%arg0: i32, %arg1: i32) -> (i32, i32, i32) {
    %c0_i32 = arith.constant 0 : i32
    %c0_i32_0 = arith.constant 0 : i32
    %c0_i32_1 = arith.constant 0 : i32
    return %arg0, %c0_i32, %c0_i32_0 : i32, i32, i32
  }
  func.func @transform_1(%arg0: i32, %arg1: i32) -> (i32, i32, i32) {
    %c0_i32 = arith.constant 0 : i32
    %c0_i32_0 = arith.constant 0 : i32
    return %arg0, %arg1, %c0_i32 : i32, i32, i32
  }
  func.func @transform_2(%arg0: i32, %arg1: i32) -> (i32, i32, i32) {
    %c0_i32 = arith.constant 0 : i32
    %c0_i32_0 = arith.constant 0 : i32
    %c0_i32_1 = arith.constant 0 : i32
    return %arg0, %c0_i32, %c0_i32_0 : i32, i32, i32
  }
}

</mosaic_0001>

<llo_original>
// kernel: tpu_custom_call.1
$region0: #{tpu_custom_call.1}
  #allocation0 [shape = 'u32[]', space=smem, size = 0x4, offset = 0x4, fixed_abs, tag = 'smem constant byte address 0x4 - core index']
  #allocation1 [shape = 'u32[72,128]{1,0:T(1,128)}', space=vmem, size = 0x9000, scoped, tag = 'internal scratch']
  #allocation2 [shape = 'f32[1,8,128]{2,1,0:T(8,128)}', space=vmem, size = 0x1000, scoped, tag = 'scratch operand']
  %s0 = inlined_call_operand.hbm [shape: f32[2,8,128], index: 0, kind: input, shape index: {}]
  %s1 = inlined_call_operand.hbm [shape: f32[2,8,128], index: 1, kind: input, shape index: {}]
  %s2 = inlined_call_operand.hbm [shape: f32[2,8,128], index: 2, kind: output, shape index: {}]
  %s3 = sld [smem:[#allocation0]]
  $region57: #{tpu_custom_call.1} parent=0
    _
  %s5 = ssub.s32 1, %s3
  %s6 = scalar_select 0, %s5, %s3
  $region1: #{tpu_custom_call.1} parent=0
    #allocation3 [shape = 'u8[8192]{0}', space=vmem, size = 0x2000, scoped, tag = 'input window, operand 0']
    #allocation4 [shape = 's32[2]{0}', space=sflag, size = 0x8, scoped, tag = 'scoped memory for tpu_custom_call.1']
    #allocation5 [shape = 's32[2]{0}', space=sflag, size = 0x8, scoped, tag = 'scoped memory for tpu_custom_call.1']
    #allocation6 [shape = 'u8[8192]{0}', space=vmem, size = 0x2000, scoped, tag = 'input window, operand 1']
    #allocation7 [shape = 's32[2]{0}', space=sflag, size = 0x8, scoped, tag = 'scoped memory for tpu_custom_call.1']
    #allocation8 [shape = 'u8[8192]{0}', space=vmem, size = 0x2000, scoped, tag = 'output window, operand 0']
    %7 = vsyncpa [#allocation4], 0
    %s8 = scalar_lea.sflag [#allocation4], 1
    %9 = vsyncpa %s8, 0
    %10 = vsyncpa [#allocation7], 0
    %s11 = scalar_lea.sflag [#allocation7], 1
    %12 = vsyncpa %s11, 0
    %13 = vsyncpa [#allocation5], 0
    %s14 = scalar_lea.sflag [#allocation5], 1
    %15 = vsyncpa %s14, 0
    loop: start=0, step=1, limit=4
    $region2: #{tpu_custom_call.1} parent=1 // loop_pre_header
      _
    $region3: #{tpu_custom_call.1} parent=1 // loop_header
      %s17 = sphi 0, %s21
      %p18 = scmp.ge.s32.totalorder %s17, 4
      %s24 = sphi 0, %s36
      %s25 = sphi 0, %s32
      %s26 = sphi 0, %s24
      %s27 = sphi 0, %s25
      %s28 = sphi 0, %s26
      %s29 = sphi 0, %s27
      %s39 = sphi 0, %s41
      %s42 = sphi 0, %s39
      %s43 = sphi 0, %s42
      %s59 = sphi 0, %s43
      %s67 = sphi 0, %s69
      %s70 = sphi 0, %s67
      %s71 = sphi 0, %s70
      %s87 = sphi 0, %s71
      %s93 = sphi 0, %s95
      %s96 = sphi 0, %s93
      %s97 = sphi 0, %s96
      %s113 = sphi 0, %s97
    $region4: #{tpu_custom_call.1} parent=1 // loop_header_branch
      %20 = sbr.rel (%p18) target = $region8
    $region5: #{tpu_custom_call.1} parent=1 // loop_body
      %s22 = ssub.s32 %s17, 1
      %s23 = ssub.s32 %s17, 2
      %s30 = sadd.s32 1, %s25
      %p31 = scmp.ge.s32.totalorder %s30, 1
      %s32 = scalar_select %p31, 0, %s30
      %s33 = sadd.s32 1, %s24
      %s34 = scalar_select %p31, %s33, %s24
      %p35 = scmp.ge.s32.totalorder %s34, 2
      %s36 = scalar_select %p35, 0, %s34
      %s37 = ssub.s32 %s24, %s36
      %p38 = scmp.eq.s32.totalorder %s37, 0
      %s40 = sadd.s32 %s39, 1
      %s41 = scalar_select %p38, %s39, %s40
      %p44 = pneg %p38
      %p45 = scmp.eq.s32.totalorder %s17, 1
      %p46 = por %p44, %p45
      %p47 = scmp.ne.s32.totalorder %s39, %s42
      %p48 = scmp.eq.s32.totalorder %s17, 0
      %p49 = por %p47, %p48
      %p50 = scmp.ne.s32.totalorder %s39, %s42
      %p51 = scmp.eq.s32.totalorder %s22, 1
      %p52 = por %p50, %p51
      %p53 = scmp.ne.s32.totalorder %s42, %s43
      %p54 = scmp.eq.s32.totalorder %s22, 0
      %p55 = por %p53, %p54
      %p56 = scmp.ne.s32.totalorder %s42, %s43
      %p57 = scmp.eq.s32.totalorder %s23, 1
      %p58 = por %p56, %p57
      %p60 = scmp.ne.s32.totalorder %s43, %s59
      %p61 = scmp.eq.s32.totalorder %s23, 0
      %p62 = por %p60, %p61
      %s63 = ssub.s32 %s24, %s36
      %s64 = ssub.s32 %s25, %s32
      %s65 = sor.u32 %s63, %s64
      %p66 = scmp.eq.s32.totalorder %s65, 0
      %s68 = sadd.s32 %s67, 1
      %s69 = scalar_select %p66, %s67, %s68
      %p72 = pneg %p66
      %p73 = scmp.eq.s32.totalorder %s17, 1
      %p74 = por %p72, %p73
      %p75 = scmp.ne.s32.totalorder %s67, %s70
      %p76 = scmp.eq.s32.totalorder %s17, 0
      %p77 = por %p75, %p76
      %p78 = scmp.ne.s32.totalorder %s67, %s70
      %p79 = scmp.eq.s32.totalorder %s22, 1
      %p80 = por %p78, %p79
      %p81 = scmp.ne.s32.totalorder %s70, %s71
      %p82 = scmp.eq.s32.totalorder %s22, 0
      %p83 = por %p81, %p82
      %p84 = scmp.ne.s32.totalorder %s70, %s71
      %p85 = scmp.eq.s32.totalorder %s23, 1
      %p86 = por %p84, %p85
      %p88 = scmp.ne.s32.totalorder %s71, %s87
      %p89 = scmp.eq.s32.totalorder %s23, 0
      %p90 = por %p88, %p89
      %s91 = ssub.s32 %s24, %s36
      %p92 = scmp.eq.s32.totalorder %s91, 0
      %s94 = sadd.s32 %s93, 1
      %s95 = scalar_select %p92, %s93, %s94
      %p98 = pneg %p92
      %p99 = scmp.eq.s32.totalorder %s17, 1
      %p100 = por %p98, %p99
      %p101 = scmp.ne.s32.totalorder %s93, %s96
      %p102 = scmp.eq.s32.totalorder %s17, 0
      %p103 = por %p101, %p102
      %p104 = scmp.ne.s32.totalorder %s93, %s96
      %p105 = scmp.eq.s32.totalorder %s22, 1
      %p106 = por %p104, %p105
      %p107 = scmp.ne.s32.totalorder %s96, %s97
      %p108 = scmp.eq.s32.totalorder %s22, 0
      %p109 = por %p107, %p108
      %p110 = scmp.ne.s32.totalorder %s96, %s97
      %p111 = scmp.eq.s32.totalorder %s23, 1
      %p112 = por %p110, %p111
      %p114 = scmp.ne.s32.totalorder %s97, %s113
      %p115 = scmp.eq.s32.totalorder %s23, 0
      %p116 = por %p114, %p115
      %p117 = scmp.le.s32.totalorder 1, %s17
      %p118 = scmp.lt.s32.totalorder %s17, 3
      %p119 = pnand %p117, %p118
      %p120 = pneg %p119
      // Predicated region
      $region9: #{tpu_custom_call.1} parent=5 // pred_check
        _
      $region10: #{tpu_custom_call.1} parent=5 // pred_check_branch
        %122 = sbr.rel (%p119) target = $region12
      $region11: #{tpu_custom_call.1} parent=5 // pred_region
        %s123 = ssub.s32 %s17, 1
      $region12: #{tpu_custom_call.1} parent=5 // pred_fallthru
        _
      %p124 = scmp.lt.s32.totalorder %s17, 2
      // Predicated region
      $region13: #{tpu_custom_call.1} parent=5 // pred_check
        %p125 = pneg %p124
      $region14: #{tpu_custom_call.1} parent=5 // pred_check_branch
        %127 = sbr.rel (%p125) target = $region16
      $region15: #{tpu_custom_call.1} parent=5 // pred_region
        // Predicated region
        $region17: #{tpu_custom_call.1} parent=15 // pred_check
          %p128 = pneg %p49
        $region18: #{tpu_custom_call.1} parent=15 // pred_check_branch
          %130 = sbr.rel (%p128) target = $region20
        $region19: #{tpu_custom_call.1} parent=15 // pred_region
          %s131 = sand.u32 %s39, 1
          %s132 = scalar_lea.sflag [#allocation4], %s131
          %s133 = sand.u32 %s39, 1
          %s134 = smul.addr %s133, 8
          %s135 = scalar_lea.vmem [#allocation3], %s134
          %137 = vsyncadd %s132, 0
          %s138 = smul.addr %s24, 8
          %s139 = scalar_lea.hbm %s0, %s138
          %s141 = sshll.u32 %s139, 4
          %s142 = int_to_ptr.hbm [resolvable:$true] %s141
          %s143 = sshll.u32 %s135, 4
          %s144 = int_to_ptr.vmem [resolvable:$true] %s143
          %146 = dma.hbm_to_vmem [thread:$0]  %s142, 128, %s144, %s132
        $region20: #{tpu_custom_call.1} parent=15 // pred_fallthru
          _
        // Predicated region
        $region21: #{tpu_custom_call.1} parent=15 // pred_check
          %p147 = pneg %p77
        $region22: #{tpu_custom_call.1} parent=15 // pred_check_branch
          %149 = sbr.rel (%p147) target = $region24
        $region23: #{tpu_custom_call.1} parent=15 // pred_region
          %s150 = sand.u32 %s67, 1
          %s151 = scalar_lea.sflag [#allocation7], %s150
          %s152 = sand.u32 %s67, 1
          %s153 = smul.addr %s152, 8
          %s154 = scalar_lea.vmem [#allocation6], %s153
          %156 = vsyncadd %s151, 0
          %s157 = sadd.s32 %s25, %s24
          %s158 = smul.addr %s157, 8
          %s159 = scalar_lea.hbm %s1, %s158
          %s161 = sshll.u32 %s159, 4
          %s162 = int_to_ptr.hbm [resolvable:$true] %s161
          %s163 = sshll.u32 %s154, 4
          %s164 = int_to_ptr.vmem [resolvable:$true] %s163
          %166 = dma.hbm_to_vmem [thread:$0]  %s162, 128, %s164, %s151
        $region24: #{tpu_custom_call.1} parent=15 // pred_fallthru
          _
      $region16: #{tpu_custom_call.1} parent=5 // pred_fallthru
        _
      %p167 = scmp.le.s32.totalorder 1, %s17
      %p168 = scmp.lt.s32.totalorder %s17, 3
      %p169 = pnand %p167, %p168
      %p170 = pneg %p169
      // Predicated region
      $region25: #{tpu_custom_call.1} parent=5 // pred_check
        _
      $region26: #{tpu_custom_call.1} parent=5 // pred_check_branch
        %172 = sbr.rel (%p169) target = $region28
      $region27: #{tpu_custom_call.1} parent=5 // pred_region
        %s173 = ssub.s32 %s17, 1
        %s174 = sand.u32 %s42, 1
        %s175 = scalar_lea.sflag [#allocation4], %s174
        %s176 = sand.u32 %s42, 1
        %s177 = smul.addr %s176, 8
        %s178 = scalar_lea.vmem [#allocation3], %s177
        // Predicated region
        $region29: #{tpu_custom_call.1} parent=27 // pred_check
          %p179 = pneg %p55
        $region30: #{tpu_custom_call.1} parent=27 // pred_check_branch
          %181 = sbr.rel (%p179) target = $region32
        $region31: #{tpu_custom_call.1} parent=27 // pred_region
          %183 = dma.done %s175, 128
        $region32: #{tpu_custom_call.1} parent=27 // pred_fallthru
          _
        %s184 = sand.u32 %s70, 1
        %s185 = scalar_lea.sflag [#allocation7], %s184
        %s186 = sand.u32 %s70, 1
        %s187 = smul.addr %s186, 8
        %s188 = scalar_lea.vmem [#allocation6], %s187
        // Predicated region
        $region33: #{tpu_custom_call.1} parent=27 // pred_check
          %p189 = pneg %p83
        $region34: #{tpu_custom_call.1} parent=27 // pred_check_branch
          %191 = sbr.rel (%p189) target = $region36
        $region35: #{tpu_custom_call.1} parent=27 // pred_region
          %193 = dma.done %s185, 128
        $region36: #{tpu_custom_call.1} parent=27 // pred_fallthru
          _
        %s194 = sand.u32 %s42, 1
        %s195 = scalar_lea.sflag [#allocation4], %s194
        %s196 = sand.u32 %s42, 1
        %s197 = smul.addr %s196, 8
        %s198 = scalar_lea.vmem [#allocation3], %s197
        %p199 = pneg %p55
        %p200 = pneg %p52
        %s201 = sand.u32 %s70, 1
        %s202 = scalar_lea.sflag [#allocation7], %s201
        %s203 = sand.u32 %s70, 1
        %s204 = smul.addr %s203, 8
        %s205 = scalar_lea.vmem [#allocation6], %s204
        %p206 = pneg %p83
        %p207 = pneg %p80
        %p208 = pneg %p109
        %p209 = pneg %p106
        %s210 = sand.u32 %s96, 1
        %s211 = scalar_lea.sflag [#allocation5], %s210
        %s212 = sand.u32 %s96, 1
        %s213 = smul.addr %s212, 8
        %s214 = scalar_lea.vmem [#allocation8], %s213
        %p215 = scmp.eq.s32.totalorder %s27, 0
        // Predicated region
        $region37: #{tpu_custom_call.1} parent=27 // pred_check
          %p216 = pneg %p215
        $region38: #{tpu_custom_call.1} parent=27 // pred_check_branch
          %218 = sbr.rel (%p216) target = $region40
        $region39: #{tpu_custom_call.1} parent=27 // pred_region
          %219 = vst [vmem:[#allocation2] sm:$0xff] 0.0
        $region40: #{tpu_custom_call.1} parent=27 // pred_fallthru
          _
        %v220 = vld [vmem:[%s178] sm:$0xff]
        %v221 = vld [vmem:[%s188] sm:$0xff]
        %v222 = vmul.f32 %v220, 0.17677669
        %223 = vmatpush.xpose.msra.mxu0 0.0
        %224 = vmatpush.xpose.msra.mxu0 0.0
        %225 = vmatpush.xpose.msra.mxu0 0.0
        %226 = vmatpush.xpose.msra.mxu0 0.0
        %227 = vmatpush.xpose.msra.mxu0 0.0
        %228 = vmatpush.xpose.msra.mxu0 0.0
        %229 = vmatpush.xpose.msra.mxu0 0.0
        %230 = vmatpush.xpose.msra.mxu0 0.0
        %231 = vmatpush.xpose.msra.mxu0 0.0
        %232 = vmatpush.xpose.msra.mxu0 0.0
        %233 = vmatpush.xpose.msra.mxu0 0.0
        %234 = vmatpush.xpose.msra.mxu0 0.0
        %235 = vmatpush.xpose.msra.mxu0 0.0
        %236 = vmatpush.xpose.msra.mxu0 0.0
        %237 = vmatpush.xpose.msra.mxu0 0.0
        %238 = vmatpush.xpose.msra.mxu0 %v221
        %239 = vmatmul.f32.gmra.mxu0 %v222
        %v240 = vpop.f32.mrf.mxu0
        %v241 = vadd.f32 0.0, %v240
        %242 = vdwg.mxu0
        %vm243 = vcmask 64512
        %v244 = vsel %vm243, %v241, -inf
        %v245 = vrot.slane %v244, 4
        %v246 = vmax.f32 %v244, %v245
        %v247 = vrot.slane %v246, 2
        %v248 = vmax.f32 %v246, %v247
        %v249 = vrot.slane %v248, 1
        %v250 = vmax.f32 %v248, %v249
        %v251 = vsub.f32 %v241, %v250
        %v252 = vmul.f32 %v251, 1.442695
        %v253 = vpow.pop %v252
        %v254 = vsel %vm243, %v253, 0.0
        %v255 = vrot.slane %v254, 4
        %v256 = vadd.f32 %v254, %v255
        %v257 = vrot.slane %v256, 2
        %v258 = vadd.f32 %v256, %v257
        %v259 = vrot.slane %v258, 1
        %v260 = vadd.f32 %v258, %v259
        %v261 = vrcp.pop %v260
        %v262 = vmul.f32 %v260, %v261
        %v263 = vsub.f32 1.0, %v262
        %v264 = vmul.f32 %v261, %v263
        %v265 = vadd.f32 %v261, %v264
        %vm266 = vweird.f32 %v260
        %vm267 = vweird.f32 %v261
        %vm268 = vmor %vm266, %vm267
        %v269 = vsel %vm268, %v261, %v265
        %v270 = vand.u32 2147483647, %v260
        %vm271 = vcmp.eq.f32.partialorder %v270, 8.507059e+37
        %v272 = vand.u32 %v260, 2147483648
        %v273 = vor.u32 1.1754944e-38, %v272
        %v274 = vsel %vm271, %v273, %v269
        %275 = vxpose.xlu0.b32.start [1/16] %v274, 128
        %276 = vxpose.xlu0.b32.cont [2/16] 0.0, 128
        %277 = vxpose.xlu0.b32.cont [3/16] 0.0, 128
        %278 = vxpose.xlu0.b32.cont [4/16] 0.0, 128
        %279 = vxpose.xlu0.b32.cont [5/16] 0.0, 128
        %280 = vxpose.xlu0.b32.cont [6/16] 0.0, 128
        %281 = vxpose.xlu0.b32.cont [7/16] 0.0, 128
        %282 = vxpose.xlu0.b32.cont [8/16] 0.0, 128
        %283 = vxpose.xlu0.b32.cont [9/16] 0.0, 128
        %284 = vxpose.xlu0.b32.cont [10/16] 0.0, 128
        %285 = vxpose.xlu0.b32.cont [11/16] 0.0, 128
        %286 = vxpose.xlu0.b32.cont [12/16] 0.0, 128
        %287 = vxpose.xlu0.b32.cont [13/16] 0.0, 128
        %288 = vxpose.xlu0.b32.cont [14/16] 0.0, 128
        %289 = vxpose.xlu0.b32.cont [15/16] 0.0, 128
        %290 = vxpose.xlu0.b32.end [16/16] 0.0, 128
        %v291 = vpop.trf.xlu0
        %v292 = vpop.trf.xlu0
        %v293 = vpop.trf.xlu0
        %v294 = vpop.trf.xlu0
        %v295 = vpop.trf.xlu0
        %v296 = vpop.trf.xlu0
        %v297 = vpop.trf.xlu0
        %v298 = vpop.trf.xlu0
        %v299 = vpop.trf.xlu0
        %v300 = vpop.trf.xlu0
        %v301 = vpop.trf.xlu0
        %v302 = vpop.trf.xlu0
        %v303 = vpop.trf.xlu0
        %v304 = vpop.trf.xlu0
        %v305 = vpop.trf.xlu0
        %v306 = vpop.trf.xlu0
        %308 = vset.pattern.permute.xlu0 0
        %309 = vperm.xlu0 %308, %v291
        %v310 = vpop.permute.xlu0 %309
        %v312 = vmul.f32 %v221, %v310
        %v313 = vld [vmem:[#allocation2] sm:$0xff]
        %v315 = vsel %vm243, %v253, 0
        %317 = vmatpush.msra.mxu0 0.0
        %318 = vmatpush.msra.mxu0 0.0
        %319 = vmatpush.msra.mxu0 0.0
        %320 = vmatpush.msra.mxu0 0.0
        %321 = vmatpush.msra.mxu0 0.0
        %322 = vmatpush.msra.mxu0 0.0
        %323 = vmatpush.msra.mxu0 0.0
        %324 = vmatpush.msra.mxu0 0.0
        %325 = vmatpush.msra.mxu0 0.0
        %326 = vmatpush.msra.mxu0 0.0
        %327 = vmatpush.msra.mxu0 0.0
        %328 = vmatpush.msra.mxu0 0.0
        %329 = vmatpush.msra.mxu0 0.0
        %330 = vmatpush.msra.mxu0 0.0
        %331 = vmatpush.msra.mxu0 0.0
        %332 = vmatpush.msra.mxu0 %v312
        %333 = vmatmul.f32.gmra.mxu0 %v315
        %v334 = vpop.f32.mrf.mxu0
        %v335 = vadd.f32 0.0, %v334
        %336 = vdwg.mxu0
        %v337 = vadd.f32 %v313, %v335
        %338 = vst [vmem:[#allocation2] sm:$0xff] %v337
        // Predicated region
        $region41: #{tpu_custom_call.1} parent=27 // pred_check
          %p339 = pneg %p215
        $region42: #{tpu_custom_call.1} parent=27 // pred_check_branch
          %341 = sbr.rel (%p339) target = $region44
        $region43: #{tpu_custom_call.1} parent=27 // pred_region
          %v342 = vld [vmem:[#allocation2] sm:$0xff]
          %343 = vst [vmem:[%s214] sm:$0xff] %v342
        $region44: #{tpu_custom_call.1} parent=27 // pred_fallthru
          _
        %s344 = sand.u32 %s96, 1
        %s345 = scalar_lea.sflag [#allocation5], %s344
        %s346 = sand.u32 %s96, 1
        %s347 = smul.addr %s346, 8
        %s348 = scalar_lea.vmem [#allocation8], %s347
        // Predicated region
        $region45: #{tpu_custom_call.1} parent=27 // pred_check
          %p349 = pneg %p106
        $region46: #{tpu_custom_call.1} parent=27 // pred_check_branch
          %351 = sbr.rel (%p349) target = $region48
        $region47: #{tpu_custom_call.1} parent=27 // pred_region
          %353 = vsyncadd %s345, 0
          %s354 = smul.addr %s26, 8
          %s355 = scalar_lea.hbm %s2, %s354
          %s357 = sshll.u32 %s348, 4
          %s358 = int_to_ptr.vmem [resolvable:$true] %s357
          %s359 = sshll.u32 %s355, 4
          %s360 = int_to_ptr.hbm [resolvable:$true] %s359
          %362 = dma.vmem_to_hbm [thread:$0]  %s358, 128, %s360, %s345
        $region48: #{tpu_custom_call.1} parent=27 // pred_fallthru
          _
      $region28: #{tpu_custom_call.1} parent=5 // pred_fallthru
        _
      %p363 = scmp.le.s32.totalorder 2, %s17
      // Predicated region
      $region49: #{tpu_custom_call.1} parent=5 // pred_check
        %p364 = pneg %p363
      $region50: #{tpu_custom_call.1} parent=5 // pred_check_branch
        %366 = sbr.rel (%p364) target = $region52
      $region51: #{tpu_custom_call.1} parent=5 // pred_region
        %s367 = ssub.s32 %s17, 2
        // Predicated region
        $region53: #{tpu_custom_call.1} parent=51 // pred_check
          %p368 = pneg %p112
        $region54: #{tpu_custom_call.1} parent=51 // pred_check_branch
          %370 = sbr.rel (%p368) target = $region56
        $region55: #{tpu_custom_call.1} parent=51 // pred_region
          %s371 = sand.u32 %s97, 1
          %s372 = scalar_lea.sflag [#allocation5], %s371
          %s373 = sand.u32 %s97, 1
          %s374 = smul.addr %s373, 8
          %s375 = scalar_lea.vmem [#allocation8], %s374
          %377 = dma.done %s372, 128
        $region56: #{tpu_custom_call.1} parent=51 // pred_fallthru
          _
      $region52: #{tpu_custom_call.1} parent=5 // pred_fallthru
        _
    $region6: #{tpu_custom_call.1} parent=1 // loop_footer
      %s21 = sadd.s32 1, %s17
    $region7: #{tpu_custom_call.1} parent=1 // loop_footer_branch
      %16 = sbr.rel target = $region3
    $region8: #{tpu_custom_call.1} parent=1 // loop_exit
      _
    %378 = vsyncpa [#allocation4], 1
    %s379 = scalar_lea.sflag [#allocation4], 1
    %380 = vsyncpa %s379, 1
    %381 = vsyncpa [#allocation7], 1
    %s382 = scalar_lea.sflag [#allocation7], 1
    %383 = vsyncpa %s382, 1
    %384 = vsyncpa [#allocation5], 1
    %s385 = scalar_lea.sflag [#allocation5], 1
    %386 = vsyncpa %s385, 1

</llo_original>
